<compile_context>
chip_gen: v6e
topology: v6e:2x2x1
jax: 0.10.0
libtpu: 0.0.40
codegen_flags: <defaults>
</compile_context>

<pallas_src>
import functools

import jax
import jax.numpy as jnp
import numpy as np
from jax import lax
from jax.experimental import pallas as pl
from jax.experimental.pallas import tpu as pltpu

# Contract dim 0 of both operands:  out = lhs^T @ rhs  (no materialized transpose).
_TN_DIMS = (((0,), (0,)), ((), ()))


def _round_up(x: int, m: int) -> int:
    return ((x + m - 1) // m) * m


def _vmem_capacity_bytes() -> int:
    """Per-core VMEM capacity (128 MiB on v5e/v6e, 64 MiB on v7x)."""
    try:
        cap = int(pltpu.get_tpu_info().vmem_capacity_bytes)
        if cap > 0:
            return cap
    except Exception:
        pass
    return 64 << 20  # conservative default (v7x per-TensorCore)


# --------------------------------------------------------------------------- #
# Kernels
# --------------------------------------------------------------------------- #
def _linear_kernel(x_ref, wt_ref, aux_ref, o_ref, *, with_bias: bool):
    """k == 0:  out = X W^T + b      (aux = bias, (1, f_pad))
       k  > 0:  g0  = norm * (X W^T) (aux = norm, (tm, 1))"""
    out = jnp.dot(x_ref[...], wt_ref[...], preferred_element_type=jnp.float32)
    if with_bias:
        out = out + aux_ref[...]
    else:
        out = aux_ref[...] * out
    o_ref[...] = out.astype(o_ref.dtype)


def _prop_kernel(a_ref, h_ref, norm_ref, *rest,
                 last_step: bool, block_k: int, h_resident: bool):
    """One streamed propagation step over a (rows, reduction) grid.

    a_ref   : (tk, tm) int8 block of A (rows = source nodes, cols = dest nodes)
    h_ref   : resident (n_pad, f_pad) bf16  OR  blocked (tk, f_pad) bf16
    norm_ref: (tm, 1) f32  (D^{-1/2} for the destination rows of this tile)
    rest    : ([bias (1, f_pad)], out (tm, f_pad), acc scratch (tm, f_pad) f32)
    """
    if last_step:
        b_ref, o_ref, acc_ref = rest
    else:
        o_ref, acc_ref = rest

    j = pl.program_id(1)

    @pl.when(j == 0)
    def _():
        acc_ref[...] = jnp.zeros_like(acc_ref)

    if h_resident:
        start = pl.multiple_of(j * block_k, block_k)
        h_blk = h_ref[pl.ds(start, block_k), :]
    else:
        h_blk = h_ref[...]

    # int8 {0,1} -> bf16 on the VPU (exact), then A_blk^T @ g_blk on the MXU.
    a_blk = a_ref[...].astype(jnp.bfloat16)
    acc_ref[...] += lax.dot_general(a_blk, h_blk, _TN_DIMS,
                                    preferred_element_type=jnp.float32)

    @pl.when(j == pl.num_programs(1) - 1)
    def _():
        nrm = norm_ref[...]
        if last_step:
            o_ref[...] = (nrm * acc_ref[...] + b_ref[...]).astype(o_ref.dtype)
        else:
            # carried state is g = N h, so the update is N^2 (A^T g).
            o_ref[...] = ((nrm * nrm) * acc_ref[...]).astype(o_ref.dtype)


def _fused_prop_kernel(a_ref, norm_ref, h0_ref, b_ref, o_ref, g_ref):
    """All k propagation steps in one pallas_call; A stays resident in VMEM.

    a_ref : (n_pad, n_pad) bf16 (exact 0/1), DMA'd once (constant index map)
    g_ref : (n_pad, f_pad) f32 scratch carrying g_t across grid steps
    """
    t = pl.program_id(0)

    @pl.when(t == 0)
    def _():
        g_ref[...] = h0_ref[...].astype(g_ref.dtype)

    prod = lax.dot_general(a_ref[...], g_ref[...].astype(jnp.bfloat16),
                           _TN_DIMS, preferred_element_type=jnp.float32)
    nrm = norm_ref[...]                      # (n_pad, 1) f32
    g_ref[...] = (nrm * nrm) * prod          # g_{t+1}

    @pl.when(t == pl.num_programs(0) - 1)
    def _():
        o_ref[...] = (nrm * prod + b_ref[...]).astype(o_ref.dtype)


# --------------------------------------------------------------------------- #
# Wrapper
# --------------------------------------------------------------------------- #
def one_layer_sgc(a, x, weight, bias, k, *, tile_n: int = 1024,
                  force_streaming: bool = False):
    """a: (N, N) dense adjacency (a[u, v] != 0 iff edge u->v); x: (N, Fin);
    weight: (Fout, Fin) (nn.Linear layout); bias: (Fout,).  Returns (N, Fout) f32.
    """
    n = a.shape[0]
    fin = x.shape[1]
    fout = weight.shape[0]
    k = int(k)

    f_pad = _round_up(max(fout, 1), 128)          # lane-dense feature width
    tile = max(512, _round_up(int(tile_n), 128))  # never run the prop grid tiny
    n_pad = _round_up(n, tile)
    grid_rows = n_pad // tile

    vmem_cap = _vmem_capacity_bytes()
    vmem_limit = min(max(vmem_cap - (8 << 20), 32 << 20), 120 << 20)

    # ---- host-side prep: pad + cast directly to the final dtypes ------------
    x_pad = jnp.pad(x.astype(jnp.bfloat16), ((0, n_pad - n), (0, 0)))
    wt_pad = jnp.pad(weight.T.astype(jnp.bfloat16), ((0, 0), (0, f_pad - fout)))
    b_pad = jnp.pad(bias.astype(jnp.float32), (0, f_pad - fout)).reshape(1, f_pad)

    if k > 0:
        a01 = (a != 0)                                           # DGL edges are unweighted
        deg = jnp.maximum(jnp.sum(a01, axis=0).astype(jnp.float32), 1.0)
        norm_pad = jnp.pad(deg ** -0.5, (0, n_pad - n)).reshape(n_pad, 1)

    # ---- feature transform first: h0 = X W^T (+b if k==0, *norm otherwise) --
    if k == 0:
        aux, aux_spec = b_pad, pl.BlockSpec((1, f_pad), lambda i: (0, 0))
        h_dtype = jnp.float32
    else:
        aux, aux_spec = norm_pad, pl.BlockSpec((tile, 1), lambda i: (i, 0))
        h_dtype = jnp.bfloat16

    h = pl.pallas_call(
        functools.partial(_linear_kernel, with_bias=(k == 0)),
        out_shape=jax.ShapeDtypeStruct((n_pad, f_pad), h_dtype),
        grid_spec=pltpu.PrefetchScalarGridSpec(
            num_scalar_prefetch=0,
            grid=(grid_rows,),
            in_specs=[pl.BlockSpec((tile, fin), lambda i: (i, 0)),
                      pl.BlockSpec((fin, f_pad), lambda i: (0, 0)),
                      aux_spec],
            out_specs=pl.BlockSpec((tile, f_pad), lambda i: (i, 0)),
        ),
        compiler_params=pltpu.CompilerParams(
            dimension_semantics=("parallel",),
            vmem_limit_bytes=vmem_limit),
    )(x_pad, wt_pad, aux)

    if k == 0:
        return h[:n, :fout]

    # ---- propagation path selection (VMEM-capacity gated) -------------------
    fused_bytes = (2 * n_pad * n_pad * 2            # resident bf16 A (2 buffers)
                   + 2 * n_pad * f_pad * 2          # h0 (bf16)
                   + 2 * n_pad * f_pad * 4          # out (f32)
                   + n_pad * f_pad * 4              # g scratch (f32)
                   + n_pad * f_pad * 6              # dot temporaries
                   + (4 << 20))                     # margin
    use_fused = (not force_streaming) and fused_bytes <= vmem_limit

    if use_fused:
        # ---- fused resident-A path: A streamed from HBM exactly once --------
        a_bf = jnp.pad((a != 0).astype(jnp.bfloat16),
                       ((0, n_pad - n), (0, n_pad - n)))
        cost = pl.CostEstimate(
            flops=2 * k * n_pad * n_pad * f_pad,
            transcendentals=0,
            bytes_accessed=n_pad * n_pad * 2 + n_pad * f_pad * 6)
        out = pl.pallas_call(
            _fused_prop_kernel,
            out_shape=jax.ShapeDtypeStruct((n_pad, f_pad), jnp.float32),
            grid_spec=pltpu.PrefetchScalarGridSpec(
                num_scalar_prefetch=0,
                grid=(k,),
                in_specs=[pl.BlockSpec((n_pad, n_pad), lambda t: (0, 0)),
                          pl.BlockSpec((n_pad, 1), lambda t: (0, 0)),
                          pl.BlockSpec((n_pad, f_pad), lambda t: (0, 0)),
                          pl.BlockSpec((1, f_pad), lambda t: (0, 0))],
                out_specs=pl.BlockSpec((n_pad, f_pad), lambda t: (0, 0)),
                scratch_shapes=[pltpu.VMEM((n_pad, f_pad), jnp.float32)],
            ),
            compiler_params=pltpu.CompilerParams(
                dimension_semantics=("arbitrary",),
                vmem_limit_bytes=vmem_limit),
            cost_estimate=cost,
        )(a_bf, norm_pad, h, b_pad)
        return out[:n, :fout]

    # ---- streaming path: int8 adjacency, k tiled launches -------------------
    a_i8 = jnp.pad((a != 0).astype(jnp.int8), ((0, n_pad - n), (0, n_pad - n)))

    stream_fixed = (2 * tile * tile * 1      # int8 A blocks (double-buffered)
                    + tile * tile * 2        # in-kernel bf16 cast of the A block
                    + 2 * tile * f_pad * 4   # out blocks
                    + tile * f_pad * 4       # f32 accumulator
                    + (6 << 20))             # margin (transposed-dot temporaries)
    h_resident = stream_fixed + 2 * n_pad * f_pad * 2 <= vmem_limit
    if h_resident:
        h_spec = pl.BlockSpec((n_pad, f_pad), lambda i, j: (0, 0))
    else:
        h_spec = pl.BlockSpec((tile, f_pad), lambda i, j: (j, 0))

    grid = (grid_rows, grid_rows)
    cost = pl.CostEstimate(
        flops=2 * n_pad * n_pad * f_pad,
        transcendentals=0,
        bytes_accessed=n_pad * n_pad + n_pad * f_pad * 6)

    for step in range(k):
        last = (step == k - 1)
        out_dtype = jnp.float32 if last else jnp.bfloat16
        operands = [a_i8, h, norm_pad]
        in_specs = [pl.BlockSpec((tile, tile), lambda i, j: (j, i)),
                    h_spec,
                    pl.BlockSpec((tile, 1), lambda i, j: (i, 0))]
        if last:
            operands.append(b_pad)
            in_specs.append(pl.BlockSpec((1, f_pad), lambda i, j: (0, 0)))
        h = pl.pallas_call(
            functools.partial(_prop_kernel, last_step=last,
                              block_k=tile, h_resident=h_resident),
            out_shape=jax.ShapeDtypeStruct((n_pad, f_pad), out_dtype),
            grid_spec=pltpu.PrefetchScalarGridSpec(
                num_scalar_prefetch=0,
                grid=grid,
                in_specs=in_specs,
                out_specs=pl.BlockSpec((tile, f_pad), lambda i, j: (i, 0)),
                scratch_shapes=[pltpu.VMEM((tile, f_pad), jnp.float32)],
            ),
            compiler_params=pltpu.CompilerParams(
                dimension_semantics=("parallel", "arbitrary"),
                vmem_limit_bytes=vmem_limit),
            cost_estimate=cost,
        )(*operands)

    return h[:n, :fout]


def one_layer_sgc_ref(a, x, weight, bias, k):
    """Pure-JAX f32 reference (mirrors DGL SGConv + nn.Linear)."""
    a01 = (a != 0).astype(jnp.float32)
    deg = jnp.maximum(jnp.sum(a01, axis=0), 1.0)
    norm = (deg ** -0.5).reshape(-1, 1)
    h = x.astype(jnp.float32)
    at = a01.T
    for _ in range(int(k)):
        h = norm * (at @ (norm * h))
    return h @ weight.T.astype(jnp.float32) + bias[None, :].astype(jnp.float32)


if __name__ == "__main__":
    # N=1100 pads to 1536 with tile 512 -> a 3x3 streaming grid (exercises the
    # tiled reduction) while the fused resident-A path also fits VMEM.
    # TODO(synk): DGL stochastic block (minibatch) forward is not modeled; the
    # kernel consumes a dense 0/1 adjacency of the (block) graph.
    N, FIN, FOUT, K = 1100, 16, 8, 2

    key = jax.random.PRNGKey(0)
    k_adj, k_x, k_w, k_b = jax.random.split(key, 4)

    adj = (jax.random.uniform(k_adj, (N, N)) > 0.9).astype(jnp.float32)
    x = jax.random.normal(k_x, (N, FIN), dtype=jnp.float32)
    weight = jax.random.normal(k_w, (FOUT, FIN), dtype=jnp.float32) / np.sqrt(FIN)
    bias = jax.random.normal(k_b, (FOUT,), dtype=jnp.float32) * 0.01

    ref = one_layer_sgc_ref(adj, x, weight, bias, K)

    # Fused resident-A path (auto-selected when it fits the VMEM budget).
    out_fused = jax.block_until_ready(
        one_layer_sgc(adj, x, weight, bias, K, tile_n=512))
    np.testing.assert_allclose(np.asarray(out_fused), np.asarray(ref),
                               rtol=3e-2, atol=3e-2)

    # Streaming int8-adjacency path (large-graph path), forced for coverage.
    out_stream = jax.block_until_ready(
        one_layer_sgc(adj, x, weight, bias, K, tile_n=512, force_streaming=True))
    np.testing.assert_allclose(np.asarray(out_stream), np.asarray(ref),
                               rtol=3e-2, atol=3e-2)

    # k == 0 degenerates to the plain linear layer.
    out_k0 = jax.block_until_ready(
        one_layer_sgc(adj, x, weight, bias, 0, tile_n=512))
    ref_k0 = x @ weight.T + bias[None, :]
    np.testing.assert_allclose(np.asarray(out_k0), np.asarray(ref_k0),
                               rtol=3e-2, atol=3e-2)

    print("KERNEL_OK")
</pallas_src>

<mosaic_0001>
module attributes {stable_mosaic.version = 11 : i64} {
  func.func @_linear_kernel(%arg0: i32, %arg1: memref<512x16xbf16, #tpu.memory_space<vmem>>, %arg2: memref<16x128xbf16, #tpu.memory_space<vmem>>, %arg3: memref<512x1xf32, #tpu.memory_space<vmem>>, %arg4: memref<512x128xbf16, #tpu.memory_space<vmem>>) attributes {dimension_semantics = [#tpu.dimension_semantics<parallel>], iteration_bounds = array<i64: 3>, scalar_prefetch = 0 : i64, scratch_operands = 0 : i64, tpu.core_type = #tpu.core_type<tc>, window_params = [{transform_indices = @transform_0, window_bounds = array<i64: 512, 16>}, {pipeline_mode = #tpu.pipeline_mode<synchronous>, transform_indices = @transform_1, window_bounds = array<i64: 16, 128>}, {transform_indices = @transform_2, window_bounds = array<i64: 512, 1>}, {transform_indices = @transform_3, window_bounds = array<i64: 512, 128>}]} {
    %c0 = arith.constant 0 : index
    %c0_0 = arith.constant 0 : index
    %0 = vector.load %arg1[%c0, %c0_0] : memref<512x16xbf16, #tpu.memory_space<vmem>>, vector<512x16xbf16>
    %c0_1 = arith.constant 0 : index
    %c0_2 = arith.constant 0 : index
    %1 = vector.load %arg2[%c0_1, %c0_2] : memref<16x128xbf16, #tpu.memory_space<vmem>>, vector<16x128xbf16>
    %cst = arith.constant dense<0.000000e+00> : vector<512x128xf32>
    %2 = tpu.matmul %0, %1, %cst {dimension_numbers = #tpu.dot_dimension_numbers<[1], [0], [0], [1], [0, 0, 1, 1], [], []>} : vector<512x16xbf16>, vector<16x128xbf16>, vector<512x128xf32> -> vector<512x128xf32>
    %c0_3 = arith.constant 0 : index
    %c0_4 = arith.constant 0 : index
    %3 = vector.load %arg3[%c0_3, %c0_4] : memref<512x1xf32, #tpu.memory_space<vmem>>, vector<512x1xf32>
    %4 = vector.broadcast %3 : vector<512x1xf32> to vector<512x128xf32>
    %5 = arith.mulf %4, %2 : vector<512x128xf32>
    %6 = arith.truncf %5 : vector<512x128xf32> to vector<512x128xbf16>
    %c0_5 = arith.constant 0 : index
    %c0_6 = arith.constant 0 : index
    %7 = vector.load %arg4[%c0_5, %c0_6] : memref<512x128xbf16, #tpu.memory_space<vmem>>, vector<512x128xbf16>
    tpu.vector_store %arg4[%c0_5, %c0_6], %6 {strides = array<i32>} : memref<512x128xbf16, #tpu.memory_space<vmem>>, vector<512x128xbf16>,
    return
  }
  func.func @transform_0(%arg0: i32) -> (i32, i32) {
    %c0_i32 = arith.constant 0 : i32
    %c0_i32_0 = arith.constant 0 : i32
    return %arg0, %c0_i32 : i32, i32
  }
  func.func @transform_1(%arg0: i32) -> (i32, i32) {
    %c0_i32 = arith.constant 0 : i32
    %c0_i32_0 = arith.constant 0 : i32
    %c0_i32_1 = arith.constant 0 : i32
    return %c0_i32, %c0_i32_0 : i32, i32
  }
  func.func @transform_2(%arg0: i32) -> (i32, i32) {
    %c0_i32 = arith.constant 0 : i32
    %c0_i32_0 = arith.constant 0 : i32
    return %arg0, %c0_i32 : i32, i32
  }
  func.func @transform_3(%arg0: i32) -> (i32, i32) {
    %c0_i32 = arith.constant 0 : i32
    %c0_i32_0 = arith.constant 0 : i32
    return %arg0, %c0_i32 : i32, i32
  }
}

</mosaic_0001>

<llo_original>
// kernel: tpu_custom_call.1
$region0: #{tpu_custom_call.1}
  #allocation0 [shape = 'u32[]', space=smem, size = 0x4, offset = 0x4, fixed_abs, tag = 'smem constant byte address 0x4 - core index']
  #allocation1 [shape = 'u32[144,128]{1,0:T(1,128)}', space=vmem, size = 0x12000, scoped, tag = 'internal scratch']
  %s0 = inlined_call_operand.vmem [shape: bf16[1536,16], index: 0, kind: input, shape index: {}]
  %s1 = inlined_call_operand.vmem [shape: bf16[16,128], index: 1, kind: input, shape index: {}]
  %s2 = inlined_call_operand.vmem [shape: f32[1536,1], index: 2, kind: input, shape index: {}]
  %s3 = inlined_call_operand.hbm [shape: bf16[1536,128], index: 3, kind: output, shape index: {}]
  %s4 = sld [smem:[#allocation0]]
  $region45: #{tpu_custom_call.1} parent=0
    _
  %s6 = ssub.s32 1, %s4
  %s7 = scalar_select 0, %s6, %s4
  $region1: #{tpu_custom_call.1} parent=0
    #allocation2 [shape = 'u8[262144]{0}', space=vmem, size = 0x40000, scoped, tag = 'output window, operand 0']
    #allocation3 [shape = 's32[2]{0}', space=sflag, size = 0x8, scoped, tag = 'scoped memory for tpu_custom_call.1']
    %8 = vsyncpa [#allocation3], 0
    %s9 = scalar_lea.sflag [#allocation3], 1
    %10 = vsyncpa %s9, 0
    loop: start=0, step=1, limit=5
    $region2: #{tpu_custom_call.1} parent=1 // loop_pre_header
      _
    $region3: #{tpu_custom_call.1} parent=1 // loop_header
      %s12 = sphi 0, %s16
      %p13 = scmp.ge.s32.totalorder %s12, 5
      %s22 = sphi 0, %s24
      %s25 = sphi 0, %s22
      %s26 = sphi 0, %s25
      %s42 = sphi 0, %s26
      %s46 = sphi 0, %s46
      %s48 = sphi 0, %s46
      %s49 = sphi 0, %s48
      %s63 = sphi 0, %s49
      %s69 = sphi 0, %s71
      %s72 = sphi 0, %s69
      %s73 = sphi 0, %s72
      %s89 = sphi 0, %s73
      %s95 = sphi 0, %s97
      %s98 = sphi 0, %s95
      %s99 = sphi 0, %s98
      %s115 = sphi 0, %s99
    $region4: #{tpu_custom_call.1} parent=1 // loop_header_branch
      %15 = sbr.rel (%p13) target = $region8
    $region5: #{tpu_custom_call.1} parent=1 // loop_body
      %s17 = ssub.s32 %s12, 1
      %s18 = ssub.s32 %s12, 2
      %s19 = sadd.s32 %s12, 1
      %s20 = ssub.s32 %s12, %s19
      %p21 = scmp.eq.s32.totalorder %s20, 0
      %s23 = sadd.s32 %s22, 1
      %s24 = scalar_select %p21, %s22, %s23
      %p27 = pneg %p21
      %p28 = scmp.eq.s32.totalorder %s12, 2
      %p29 = por %p27, %p28
      %p30 = scmp.ne.s32.totalorder %s22, %s25
      %p31 = scmp.eq.s32.totalorder %s12, 0
      %p32 = por %p30, %p31
      %p33 = scmp.ne.s32.totalorder %s22, %s25
      %p34 = scmp.eq.s32.totalorder %s17, 2
      %p35 = por %p33, %p34
      %p36 = scmp.ne.s32.totalorder %s25, %s26
      %p37 = scmp.eq.s32.totalorder %s17, 0
      %p38 = por %p36, %p37
      %p39 = scmp.ne.s32.totalorder %s25, %s26
      %p40 = scmp.eq.s32.totalorder %s18, 2
      %p41 = por %p39, %p40
      %p43 = scmp.ne.s32.totalorder %s26, %s42
      %p44 = scmp.eq.s32.totalorder %s18, 0
      %p45 = por %p43, %p44
      %s47 = sadd.s32 %s46, 1
      %p50 = scmp.eq.s32.totalorder %s12, 2
      %p51 = scmp.ne.s32.totalorder %s46, %s48
      %p52 = scmp.eq.s32.totalorder %s12, 0
      %p53 = por %p51, %p52
      %p54 = scmp.ne.s32.totalorder %s46, %s48
      %p55 = scmp.eq.s32.totalorder %s17, 2
      %p56 = por %p54, %p55
      %p57 = scmp.ne.s32.totalorder %s48, %s49
      %p58 = scmp.eq.s32.totalorder %s17, 0
      %p59 = por %p57, %p58
      %p60 = scmp.ne.s32.totalorder %s48, %s49
      %p61 = scmp.eq.s32.totalorder %s18, 2
      %p62 = por %p60, %p61
      %p64 = scmp.ne.s32.totalorder %s49, %s63
      %p65 = scmp.eq.s32.totalorder %s18, 0
      %p66 = por %p64, %p65
      %s67 = ssub.s32 %s12, %s19
      %p68 = scmp.eq.s32.totalorder %s67, 0
      %s70 = sadd.s32 %s69, 1
      %s71 = scalar_select %p68, %s69, %s70
      %p74 = pneg %p68
      %p75 = scmp.eq.s32.totalorder %s12, 2
      %p76 = por %p74, %p75
      %p77 = scmp.ne.s32.totalorder %s69, %s72
      %p78 = scmp.eq.s32.totalorder %s12, 0
      %p79 = por %p77, %p78
      %p80 = scmp.ne.s32.totalorder %s69, %s72
      %p81 = scmp.eq.s32.totalorder %s17, 2
      %p82 = por %p80, %p81
      %p83 = scmp.ne.s32.totalorder %s72, %s73
      %p84 = scmp.eq.s32.totalorder %s17, 0
      %p85 = por %p83, %p84
      %p86 = scmp.ne.s32.totalorder %s72, %s73
      %p87 = scmp.eq.s32.totalorder %s18, 2
      %p88 = por %p86, %p87
      %p90 = scmp.ne.s32.totalorder %s73, %s89
      %p91 = scmp.eq.s32.totalorder %s18, 0
      %p92 = por %p90, %p91
      %s93 = ssub.s32 %s12, %s19
      %p94 = scmp.eq.s32.totalorder %s93, 0
      %s96 = sadd.s32 %s95, 1
      %s97 = scalar_select %p94, %s95, %s96
      %p100 = pneg %p94
      %p101 = scmp.eq.s32.totalorder %s12, 2
      %p102 = por %p100, %p101
      %p103 = scmp.ne.s32.totalorder %s95, %s98
      %p104 = scmp.eq.s32.totalorder %s12, 0
      %p105 = por %p103, %p104
      %p106 = scmp.ne.s32.totalorder %s95, %s98
      %p107 = scmp.eq.s32.totalorder %s17, 2
      %p108 = por %p106, %p107
      %p109 = scmp.ne.s32.totalorder %s98, %s99
      %p110 = scmp.eq.s32.totalorder %s17, 0
      %p111 = por %p109, %p110
      %p112 = scmp.ne.s32.totalorder %s98, %s99
      %p113 = scmp.eq.s32.totalorder %s18, 2
      %p114 = por %p112, %p113
      %p116 = scmp.ne.s32.totalorder %s99, %s115
      %p117 = scmp.eq.s32.totalorder %s18, 0
      %p118 = por %p116, %p117
      %p119 = scmp.le.s32.totalorder 1, %s12
      %p120 = scmp.lt.s32.totalorder %s12, 4
      %p121 = pnand %p119, %p120
      %p122 = pneg %p121
      // Predicated region
      $region9: #{tpu_custom_call.1} parent=5 // pred_check
        _
      $region10: #{tpu_custom_call.1} parent=5 // pred_check_branch
        %124 = sbr.rel (%p121) target = $region12
      $region11: #{tpu_custom_call.1} parent=5 // pred_region
        %s125 = ssub.s32 %s12, 1
        // Predicated region
        $region13: #{tpu_custom_call.1} parent=11 // pred_check
          %p126 = pneg %p59
        $region14: #{tpu_custom_call.1} parent=11 // pred_check_branch
          %128 = sbr.rel (%p126) target = $region16
        $region15: #{tpu_custom_call.1} parent=11 // pred_region
          _
        $region16: #{tpu_custom_call.1} parent=11 // pred_fallthru
          _
      $region12: #{tpu_custom_call.1} parent=5 // pred_fallthru
        _
      %p129 = scmp.lt.s32.totalorder %s12, 3
      // Predicated region
      $region17: #{tpu_custom_call.1} parent=5 // pred_check
        %p130 = pneg %p129
      $region18: #{tpu_custom_call.1} parent=5 // pred_check_branch
        %132 = sbr.rel (%p130) target = $region20
      $region19: #{tpu_custom_call.1} parent=5 // pred_region
        // Predicated region
        $region21: #{tpu_custom_call.1} parent=19 // pred_check
          %p133 = pneg %p32
        $region22: #{tpu_custom_call.1} parent=19 // pred_check_branch
          %135 = sbr.rel (%p133) target = $region24
        $region23: #{tpu_custom_call.1} parent=19 // pred_region
          %s136 = smul.u32 64, %s12
          %p137 = scmp.lt.s32.totalorder %s136, 191
          %s138 = scalar_select %p137, %s136, 191
          %s139 = smul.addr %s138, 4
          %s140 = scalar_lea.vmem %s0, %s139
          %s141 = smul.u32 64, %s12
        $region24: #{tpu_custom_call.1} parent=19 // pred_fallthru
          _
        // Predicated region
        $region25: #{tpu_custom_call.1} parent=19 // pred_check
          %p142 = pneg %p79
        $region26: #{tpu_custom_call.1} parent=19 // pred_check_branch
          %144 = sbr.rel (%p142) target = $region28
        $region27: #{tpu_custom_call.1} parent=19 // pred_region
          %s145 = smul.u32 64, %s12
          %p146 = scmp.lt.s32.totalorder %s145, 191
          %s147 = scalar_select %p146, %s145, 191
          %s148 = smul.addr %s147, 8
          %s149 = scalar_lea.vmem %s2, %s148
          %s150 = smul.u32 64, %s12
        $region28: #{tpu_custom_call.1} parent=19 // pred_fallthru
          _
      $region20: #{tpu_custom_call.1} parent=5 // pred_fallthru
        _
      %p151 = scmp.le.s32.totalorder 1, %s12
      %p152 = scmp.lt.s32.totalorder %s12, 4
      %p153 = pnand %p151, %p152
      %p154 = pneg %p153
      // Predicated region
      $region29: #{tpu_custom_call.1} parent=5 // pred_check
        _
      $region30: #{tpu_custom_call.1} parent=5 // pred_check_branch
        %156 = sbr.rel (%p153) target = $region32
      $region31: #{tpu_custom_call.1} parent=5 // pred_region
        %s157 = ssub.s32 %s12, 1
        %s158 = smul.u32 64, %s17
        %p159 = scmp.lt.s32.totalorder %s158, 191
        %s160 = scalar_select %p159, %s158, 191
        %s161 = smul.addr %s160, 4
        %s162 = scalar_lea.vmem %s0, %s161
        %p163 = pneg %p38
        %p164 = pneg %p35
        %p165 = pneg %p59
        %p166 = pneg %p56
        %s167 = smul.u32 64, %s17
        %p168 = scmp.lt.s32.totalorder %s167, 191
        %s169 = scalar_select %p168, %s167, 191
        %s170 = smul.addr %s169, 8
        %s171 = scalar_lea.vmem %s2, %s170
        %p172 = pneg %p85
        %p173 = pneg %p82
        %p174 = pneg %p111
        %p175 = pneg %p108
        %s176 = sand.u32 %s98, 1
        %s177 = scalar_lea.sflag [#allocation3], %s176
        %s178 = sand.u32 %s98, 1
        %s179 = smul.addr %s178, 256
        %s180 = scalar_lea.vmem [#allocation2], %s179
        %s181 = smul.u32 64, %s17
        %p182 = scmp.lt.s32.totalorder %s181, 191
        %s183 = scalar_select %p182, %s181, 191
        %s184 = smul.addr %s183, 4
        %s185 = scalar_lea.vmem %s0, %s184
        %s186 = smul.u32 64, %s17
        %s187 = smul.u32 64, %s17
        %p188 = scmp.lt.s32.totalorder %s187, 191
        %s189 = scalar_select %p188, %s187, 191
        %s190 = smul.addr %s189, 8
        %s191 = scalar_lea.vmem %s2, %s190
        %s192 = smul.u32 64, %s17
        %s193 = smul.u32 64, %s17
        %v195 = vld [vmem:[%s185] sm:$0xf]
        %v196 = vld [vmem:[%s185 + $0x4] sm:$0xf]
        %v197 = vld [vmem:[%s185 + $0x8] sm:$0xf]
        %v198 = vld [vmem:[%s185 + $0xc] sm:$0xf]
        %v199 = vld [vmem:[%s185 + $0x10] sm:$0xf]
        %v200 = vld [vmem:[%s185 + $0x14] sm:$0xf]
        %v201 = vld [vmem:[%s185 + $0x18] sm:$0xf]
        %v202 = vld [vmem:[%s185 + $0x1c] sm:$0xf]
        %v203 = vld [vmem:[%s185 + $0x20] sm:$0xf]
        %v204 = vld [vmem:[%s185 + $0x24] sm:$0xf]
        %v205 = vld [vmem:[%s185 + $0x28] sm:$0xf]
        %v206 = vld [vmem:[%s185 + $0x2c] sm:$0xf]
        %v207 = vld [vmem:[%s185 + $0x30] sm:$0xf]
        %v208 = vld [vmem:[%s185 + $0x34] sm:$0xf]
        %v209 = vld [vmem:[%s185 + $0x38] sm:$0xf]
        %v210 = vld [vmem:[%s185 + $0x3c] sm:$0xf]
        %v211 = vld [vmem:[%s185 + $0x40] sm:$0xf]
        %v212 = vld [vmem:[%s185 + $0x44] sm:$0xf]
        %v213 = vld [vmem:[%s185 + $0x48] sm:$0xf]
        %v214 = vld [vmem:[%s185 + $0x4c] sm:$0xf]
        %v215 = vld [vmem:[%s185 + $0x50] sm:$0xf]
        %v216 = vld [vmem:[%s185 + $0x54] sm:$0xf]
        %v217 = vld [vmem:[%s185 + $0x58] sm:$0xf]
        %v218 = vld [vmem:[%s185 + $0x5c] sm:$0xf]
        %v219 = vld [vmem:[%s185 + $0x60] sm:$0xf]
        %v220 = vld [vmem:[%s185 + $0x64] sm:$0xf]
        %v221 = vld [vmem:[%s185 + $0x68] sm:$0xf]
        %v222 = vld [vmem:[%s185 + $0x6c] sm:$0xf]
        %v223 = vld [vmem:[%s185 + $0x70] sm:$0xf]
        %v224 = vld [vmem:[%s185 + $0x74] sm:$0xf]
        %v225 = vld [vmem:[%s185 + $0x78] sm:$0xf]
        %v226 = vld [vmem:[%s185 + $0x7c] sm:$0xf]
        %v227 = vld [vmem:[%s185 + $0x80] sm:$0xf]
        %v228 = vld [vmem:[%s185 + $0x84] sm:$0xf]
        %v229 = vld [vmem:[%s185 + $0x88] sm:$0xf]
        %v230 = vld [vmem:[%s185 + $0x8c] sm:$0xf]
        %v231 = vld [vmem:[%s185 + $0x90] sm:$0xf]
        %v232 = vld [vmem:[%s185 + $0x94] sm:$0xf]
        %v233 = vld [vmem:[%s185 + $0x98] sm:$0xf]
        %v234 = vld [vmem:[%s185 + $0x9c] sm:$0xf]
        %v235 = vld [vmem:[%s185 + $0xa0] sm:$0xf]
        %v236 = vld [vmem:[%s185 + $0xa4] sm:$0xf]
        %v237 = vld [vmem:[%s185 + $0xa8] sm:$0xf]
        %v238 = vld [vmem:[%s185 + $0xac] sm:$0xf]
        %v239 = vld [vmem:[%s185 + $0xb0] sm:$0xf]
        %v240 = vld [vmem:[%s185 + $0xb4] sm:$0xf]
        %v241 = vld [vmem:[%s185 + $0xb8] sm:$0xf]
        %v242 = vld [vmem:[%s185 + $0xbc] sm:$0xf]
        %v243 = vld [vmem:[%s185 + $0xc0] sm:$0xf]
        %v244 = vld [vmem:[%s185 + $0xc4] sm:$0xf]
        %v245 = vld [vmem:[%s185 + $0xc8] sm:$0xf]
        %v246 = vld [vmem:[%s185 + $0xcc] sm:$0xf]
        %v247 = vld [vmem:[%s185 + $0xd0] sm:$0xf]
        %v248 = vld [vmem:[%s185 + $0xd4] sm:$0xf]
        %v249 = vld [vmem:[%s185 + $0xd8] sm:$0xf]
        %v250 = vld [vmem:[%s185 + $0xdc] sm:$0xf]
        %v251 = vld [vmem:[%s185 + $0xe0] sm:$0xf]
        %v252 = vld [vmem:[%s185 + $0xe4] sm:$0xf]
        %v253 = vld [vmem:[%s185 + $0xe8] sm:$0xf]
        %v254 = vld [vmem:[%s185 + $0xec] sm:$0xf]
        %v255 = vld [vmem:[%s185 + $0xf0] sm:$0xf]
        %v256 = vld [vmem:[%s185 + $0xf4] sm:$0xf]
        %v257 = vld [vmem:[%s185 + $0xf8] sm:$0xf]
        %v258 = vld [vmem:[%s185 + $0xfc] sm:$0xf]
        %v259 = vld [vmem:[%s1] sm:$0xf]
        %v260 = vld [vmem:[%s1 + $0x4] sm:$0xf]
        %v325 = vunpack.c.l.b16 %v195
        %v326 = vunpack.c.l.b16 %v196
        %v327 = vunpack.c.l.b16 %v197
        %v328 = vunpack.c.l.b16 %v198
        %v329 = vunpack.c.l.b16 %v199
        %v330 = vunpack.c.l.b16 %v200
        %v331 = vunpack.c.l.b16 %v201
        %v332 = vunpack.c.l.b16 %v202
        %v333 = vunpack.c.l.b16 %v203
        %v334 = vunpack.c.l.b16 %v204
        %v335 = vunpack.c.l.b16 %v205
        %v336 = vunpack.c.l.b16 %v206
        %v337 = vunpack.c.l.b16 %v207
        %v338 = vunpack.c.l.b16 %v208
        %v339 = vunpack.c.l.b16 %v209
        %v340 = vunpack.c.l.b16 %v210
        %v341 = vunpack.c.l.b16 %v211
        %v342 = vunpack.c.l.b16 %v212
        %v343 = vunpack.c.l.b16 %v213
        %v344 = vunpack.c.l.b16 %v214
        %v345 = vunpack.c.l.b16 %v215
        %v346 = vunpack.c.l.b16 %v216
        %v347 = vunpack.c.l.b16 %v217
        %v348 = vunpack.c.l.b16 %v218
        %v349 = vunpack.c.l.b16 %v219
        %v350 = vunpack.c.l.b16 %v220
        %v351 = vunpack.c.l.b16 %v221
        %v352 = vunpack.c.l.b16 %v222
        %v353 = vunpack.c.l.b16 %v223
        %v354 = vunpack.c.l.b16 %v224
        %v355 = vunpack.c.l.b16 %v225
        %v356 = vunpack.c.l.b16 %v226
        %v357 = vunpack.c.l.b16 %v227
        %v358 = vunpack.c.l.b16 %v228
        %v359 = vunpack.c.l.b16 %v229
        %v360 = vunpack.c.l.b16 %v230
        %v361 = vunpack.c.l.b16 %v231
        %v362 = vunpack.c.l.b16 %v232
        %v363 = vunpack.c.l.b16 %v233
        %v364 = vunpack.c.l.b16 %v234
        %v365 = vunpack.c.l.b16 %v235
        %v366 = vunpack.c.l.b16 %v236
        %v367 = vunpack.c.l.b16 %v237
        %v368 = vunpack.c.l.b16 %v238
        %v369 = vunpack.c.l.b16 %v239
        %v370 = vunpack.c.l.b16 %v240
        %v371 = vunpack.c.l.b16 %v241
        %v372 = vunpack.c.l.b16 %v242
        %v373 = vunpack.c.l.b16 %v243
        %v374 = vunpack.c.l.b16 %v244
        %v375 = vunpack.c.l.b16 %v245
        %v376 = vunpack.c.l.b16 %v246
        %v377 = vunpack.c.l.b16 %v247
        %v378 = vunpack.c.l.b16 %v248
        %v379 = vunpack.c.l.b16 %v249
        %v380 = vunpack.c.l.b16 %v250
        %v381 = vunpack.c.l.b16 %v251
        %v382 = vunpack.c.l.b16 %v252
        %v383 = vunpack.c.l.b16 %v253
        %v384 = vunpack.c.l.b16 %v254
        %v385 = vunpack.c.l.b16 %v255
        %v386 = vunpack.c.l.b16 %v256
        %v387 = vunpack.c.l.b16 %v257
        %v388 = vunpack.c.l.b16 %v258
        %v389 = vpack.c.b16 %v326, %v325
        %v390 = vpack.c.b16 %v328, %v327
        %v391 = vpack.c.b16 %v330, %v329
        %v392 = vpack.c.b16 %v332, %v331
        %v393 = vpack.c.b16 %v334, %v333
        %v394 = vpack.c.b16 %v336, %v335
        %v395 = vpack.c.b16 %v338, %v337
        %v396 = vpack.c.b16 %v340, %v339
        %v397 = vpack.c.b16 %v342, %v341
        %v398 = vpack.c.b16 %v344, %v343
        %v399 = vpack.c.b16 %v346, %v345
        %v400 = vpack.c.b16 %v348, %v347
        %v401 = vpack.c.b16 %v350, %v349
        %v402 = vpack.c.b16 %v352, %v351
        %v403 = vpack.c.b16 %v354, %v353
        %v404 = vpack.c.b16 %v356, %v355
        %v405 = vpack.c.b16 %v358, %v357
        %v406 = vpack.c.b16 %v360, %v359
        %v407 = vpack.c.b16 %v362, %v361
        %v408 = vpack.c.b16 %v364, %v363
        %v409 = vpack.c.b16 %v366, %v365
        %v410 = vpack.c.b16 %v368, %v367
        %v411 = vpack.c.b16 %v370, %v369
        %v412 = vpack.c.b16 %v372, %v371
        %v413 = vpack.c.b16 %v374, %v373
        %v414 = vpack.c.b16 %v376, %v375
        %v415 = vpack.c.b16 %v378, %v377
        %v416 = vpack.c.b16 %v380, %v379
        %v417 = vpack.c.b16 %v382, %v381
        %v418 = vpack.c.b16 %v384, %v383
        %v419 = vpack.c.b16 %v386, %v385
        %v420 = vpack.c.b16 %v388, %v387
        %v423 = vunpack.c.l.b16 %v259
        %v424 = vunpack.c.l.b16 %v260
        %v425 = vpack.c.b16 %v424, %v423
        %vm427 = vcmask 130048
        %v429 = vsel %vm427, %v389, 0
        %v432 = vsel %vm427, %v390, 0
        %v435 = vsel %vm427, %v391, 0
        %v438 = vsel %vm427, %v392, 0
        %v441 = vsel %vm427, %v393, 0
        %v444 = vsel %vm427, %v394, 0
        %v447 = vsel %vm427, %v395, 0
        %v450 = vsel %vm427, %v396, 0
        %v453 = vsel %vm427, %v397, 0
        %v456 = vsel %vm427, %v398, 0
        %v459 = vsel %vm427, %v399, 0
        %v462 = vsel %vm427, %v400, 0
        %v465 = vsel %vm427, %v401, 0
        %v468 = vsel %vm427, %v402, 0
        %v471 = vsel %vm427, %v403, 0
        %v474 = vsel %vm427, %v404, 0
        %v477 = vsel %vm427, %v405, 0
        %v480 = vsel %vm427, %v406, 0
        %v483 = vsel %vm427, %v407, 0
        %v486 = vsel %vm427, %v408, 0
        %v489 = vsel %vm427, %v409, 0
        %v492 = vsel %vm427, %v410, 0
        %v495 = vsel %vm427, %v411, 0
        %v498 = vsel %vm427, %v412, 0
        %v501 = vsel %vm427, %v413, 0
        %v504 = vsel %vm427, %v414, 0
        %v507 = vsel %vm427, %v415, 0
        %v510 = vsel %vm427, %v416, 0
        %v513 = vsel %vm427, %v417, 0
        %v516 = vsel %vm427, %v418, 0
        %v519 = vsel %vm427, %v419, 0
        %v522 = vsel %vm427, %v420, 0
        %524 = vmatprep.subr.bf16.mxu0 0
        %525 = vmatpush1.bf16.msra.mxu0 0
        %526 = vmatprep.subr.bf16.mxu0 0
        %527 = vmatpush1.bf16.msra.mxu0 0
        %528 = vmatprep.subr.bf16.mxu0 0
        %529 = vmatpush1.bf16.msra.mxu0 0
        %530 = vmatprep.subr.bf16.mxu0 0
        %531 = vmatpush1.bf16.msra.mxu0 0
        %532 = vmatprep.subr.bf16.mxu0 0
        %533 = vmatpush1.bf16.msra.mxu0 0
        %534 = vmatprep.subr.bf16.mxu0 0
        %535 = vmatpush1.bf16.msra.mxu0 0
        %536 = vmatprep.subr.bf16.mxu0 0
        %537 = vmatpush1.bf16.msra.mxu0 0
        %538 = vmatprep.subr.bf16.mxu0 0
        %539 = vmatpush1.bf16.msra.mxu0 %v425
        %540 = vmatprep.subr.bf16.mxu0 0
        %541 = vmatpush2.bf16.msra.mxu0 0
        %542 = vmatprep.subr.bf16.mxu0 0
        %543 = vmatpush2.bf16.msra.mxu0 0
        %544 = vmatprep.subr.bf16.mxu0 0
        %545 = vmatpush2.bf16.msra.mxu0 0
        %546 = vmatprep.subr.bf16.mxu0 0
        %547 = vmatpush2.bf16.msra.mxu0 0
        %548 = vmatprep.subr.bf16.mxu0 0
        %549 = vmatpush2.bf16.msra.mxu0 0
        %550 = vmatprep.subr.bf16.mxu0 0
        %551 = vmatpush2.bf16.msra.mxu0 0
        %552 = vmatprep.subr.bf16.mxu0 0
        %553 = vmatpush2.bf16.msra.mxu0 0
        %554 = vmatprep.subr.bf16.mxu0 0
        %555 = vmatpush2.bf16.msra.mxu0 0
        %556 = vmatprep.mubr.bf16.mxu0 0
        %557 = vmatmul.mubr.bf16.gmra.mxu0 %v429
        %v558 = vpop.f32.mrf.mxu0
        %v559 = vadd.f32 0.0, %v558
        %v560 = vpop.f32.mrf.mxu0
        %v561 = vpop.f32.mrf.mxu0
        %v562 = vadd.f32 0.0, %v561
        %v563 = vpop.f32.mrf.mxu0
        %564 = vmatprep.mubr.bf16.mxu0 0
        %565 = vmatmul.mubr.bf16.gmra.mxu0 %v432
        %v566 = vpop.f32.mrf.mxu0
        %v567 = vadd.f32 0.0, %v566
        %v568 = vpop.f32.mrf.mxu0
        %v569 = vpop.f32.mrf.mxu0
        %v570 = vadd.f32 0.0, %v569
        %v571 = vpop.f32.mrf.mxu0
        %572 = vmatprep.mubr.bf16.mxu0 0
        %573 = vmatmul.mubr.bf16.gmra.mxu0 %v435
        %v574 = vpop.f32.mrf.mxu0
        %v575 = vadd.f32 0.0, %v574
        %v576 = vpop.f32.mrf.mxu0
        %v577 = vpop.f32.mrf.mxu0
        %v578 = vadd.f32 0.0, %v577
        %v579 = vpop.f32.mrf.mxu0
        %580 = vmatprep.mubr.bf16.mxu0 0
        %581 = vmatmul.mubr.bf16.gmra.mxu0 %v438
        %v582 = vpop.f32.mrf.mxu0
        %v583 = vadd.f32 0.0, %v582
        %v584 = vpop.f32.mrf.mxu0
        %v585 = vpop.f32.mrf.mxu0
        %v586 = vadd.f32 0.0, %v585
        %v587 = vpop.f32.mrf.mxu0
        %588 = vmatprep.mubr.bf16.mxu0 0
        %589 = vmatmul.mubr.bf16.gmra.mxu0 %v441
        %v590 = vpop.f32.mrf.mxu0
        %v591 = vadd.f32 0.0, %v590
        %v592 = vpop.f32.mrf.mxu0
        %v593 = vpop.f32.mrf.mxu0
        %v594 = vadd.f32 0.0, %v593
        %v595 = vpop.f32.mrf.mxu0
        %596 = vmatprep.mubr.bf16.mxu0 0
        %597 = vmatmul.mubr.bf16.gmra.mxu0 %v444
        %v598 = vpop.f32.mrf.mxu0
        %v599 = vadd.f32 0.0, %v598
        %v600 = vpop.f32.mrf.mxu0
        %v601 = vpop.f32.mrf.mxu0
        %v602 = vadd.f32 0.0, %v601
        %v603 = vpop.f32.mrf.mxu0
        %604 = vmatprep.mubr.bf16.mxu0 0
        %605 = vmatmul.mubr.bf16.gmra.mxu0 %v447
        %v606 = vpop.f32.mrf.mxu0
        %v607 = vadd.f32 0.0, %v606
        %v608 = vpop.f32.mrf.mxu0
        %v609 = vpop.f32.mrf.mxu0
        %v610 = vadd.f32 0.0, %v609
        %v611 = vpop.f32.mrf.mxu0
        %612 = vmatprep.mubr.bf16.mxu0 0
        %613 = vmatmul.mubr.bf16.gmra.mxu0 %v450
        %v614 = vpop.f32.mrf.mxu0
        %v615 = vadd.f32 0.0, %v614
        %v616 = vpop.f32.mrf.mxu0
        %v617 = vpop.f32.mrf.mxu0
        %v618 = vadd.f32 0.0, %v617
        %v619 = vpop.f32.mrf.mxu0
        %620 = vmatprep.mubr.bf16.mxu0 0
        %621 = vmatmul.mubr.bf16.gmra.mxu0 %v453
        %v622 = vpop.f32.mrf.mxu0
        %v623 = vadd.f32 0.0, %v622
        %v624 = vpop.f32.mrf.mxu0
        %v625 = vpop.f32.mrf.mxu0
        %v626 = vadd.f32 0.0, %v625
        %v627 = vpop.f32.mrf.mxu0
        %628 = vmatprep.mubr.bf16.mxu0 0
        %629 = vmatmul.mubr.bf16.gmra.mxu0 %v456
        %v630 = vpop.f32.mrf.mxu0
        %v631 = vadd.f32 0.0, %v630
        %v632 = vpop.f32.mrf.mxu0
        %v633 = vpop.f32.mrf.mxu0
        %v634 = vadd.f32 0.0, %v633
        %v635 = vpop.f32.mrf.mxu0
        %636 = vmatprep.mubr.bf16.mxu0 0
        %637 = vmatmul.mubr.bf16.gmra.mxu0 %v459
        %v638 = vpop.f32.mrf.mxu0
        %v639 = vadd.f32 0.0, %v638
        %v640 = vpop.f32.mrf.mxu0
        %v641 = vpop.f32.mrf.mxu0
        %v642 = vadd.f32 0.0, %v641
        %v643 = vpop.f32.mrf.mxu0
        %644 = vmatprep.mubr.bf16.mxu0 0
        %645 = vmatmul.mubr.bf16.gmra.mxu0 %v462
        %v646 = vpop.f32.mrf.mxu0
        %v647 = vadd.f32 0.0, %v646
        %v648 = vpop.f32.mrf.mxu0
        %v649 = vpop.f32.mrf.mxu0
        %v650 = vadd.f32 0.0, %v649
        %v651 = vpop.f32.mrf.mxu0
        %652 = vmatprep.mubr.bf16.mxu0 0
        %653 = vmatmul.mubr.bf16.gmra.mxu0 %v465
        %v654 = vpop.f32.mrf.mxu0
        %v655 = vadd.f32 0.0, %v654
        %v656 = vpop.f32.mrf.mxu0
        %v657 = vpop.f32.mrf.mxu0
        %v658 = vadd.f32 0.0, %v657
        %v659 = vpop.f32.mrf.mxu0
        %660 = vmatprep.mubr.bf16.mxu0 0
        %661 = vmatmul.mubr.bf16.gmra.mxu0 %v468
        %v662 = vpop.f32.mrf.mxu0
        %v663 = vadd.f32 0.0, %v662
        %v664 = vpop.f32.mrf.mxu0
        %v665 = vpop.f32.mrf.mxu0
        %v666 = vadd.f32 0.0, %v665
        %v667 = vpop.f32.mrf.mxu0
        %668 = vmatprep.mubr.bf16.mxu0 0
        %669 = vmatmul.mubr.bf16.gmra.mxu0 %v471
        %v670 = vpop.f32.mrf.mxu0
        %v671 = vadd.f32 0.0, %v670
        %v672 = vpop.f32.mrf.mxu0
        %v673 = vpop.f32.mrf.mxu0
        %v674 = vadd.f32 0.0, %v673
        %v675 = vpop.f32.mrf.mxu0
        %676 = vmatprep.mubr.bf16.mxu0 0
        %677 = vmatmul.mubr.bf16.gmra.mxu0 %v474
        %v678 = vpop.f32.mrf.mxu0
        %v679 = vadd.f32 0.0, %v678
        %v680 = vpop.f32.mrf.mxu0
        %v681 = vpop.f32.mrf.mxu0
        %v682 = vadd.f32 0.0, %v681
        %v683 = vpop.f32.mrf.mxu0
        %684 = vmatprep.mubr.bf16.mxu0 0
        %685 = vmatmul.mubr.bf16.gmra.mxu0 %v477
        %v686 = vpop.f32.mrf.mxu0
        %v687 = vadd.f32 0.0, %v686
        %v688 = vpop.f32.mrf.mxu0
        %v689 = vpop.f32.mrf.mxu0
        %v690 = vadd.f32 0.0, %v689
        %v691 = vpop.f32.mrf.mxu0
        %692 = vmatprep.mubr.bf16.mxu0 0
        %693 = vmatmul.mubr.bf16.gmra.mxu0 %v480
        %v694 = vpop.f32.mrf.mxu0
        %v695 = vadd.f32 0.0, %v694
        %v696 = vpop.f32.mrf.mxu0
        %v697 = vpop.f32.mrf.mxu0
        %v698 = vadd.f32 0.0, %v697
        %v699 = vpop.f32.mrf.mxu0
        %700 = vmatprep.mubr.bf16.mxu0 0
        %701 = vmatmul.mubr.bf16.gmra.mxu0 %v483
        %v702 = vpop.f32.mrf.mxu0
        %v703 = vadd.f32 0.0, %v702
        %v704 = vpop.f32.mrf.mxu0
        %v705 = vpop.f32.mrf.mxu0
        %v706 = vadd.f32 0.0, %v705
        %v707 = vpop.f32.mrf.mxu0
        %708 = vmatprep.mubr.bf16.mxu0 0
        %709 = vmatmul.mubr.bf16.gmra.mxu0 %v486
        %v710 = vpop.f32.mrf.mxu0
        %v711 = vadd.f32 0.0, %v710
        %v712 = vpop.f32.mrf.mxu0
        %v713 = vpop.f32.mrf.mxu0
        %v714 = vadd.f32 0.0, %v713
        %v715 = vpop.f32.mrf.mxu0
        %716 = vmatprep.mubr.bf16.mxu0 0
        %717 = vmatmul.mubr.bf16.gmra.mxu0 %v489
        %v718 = vpop.f32.mrf.mxu0
        %v719 = vadd.f32 0.0, %v718
        %v720 = vpop.f32.mrf.mxu0
        %v721 = vpop.f32.mrf.mxu0
        %v722 = vadd.f32 0.0, %v721
        %v723 = vpop.f32.mrf.mxu0
        %724 = vmatprep.mubr.bf16.mxu0 0
        %725 = vmatmul.mubr.bf16.gmra.mxu0 %v492
        %v726 = vpop.f32.mrf.mxu0
        %v727 = vadd.f32 0.0, %v726
        %v728 = vpop.f32.mrf.mxu0
        %v729 = vpop.f32.mrf.mxu0
        %v730 = vadd.f32 0.0, %v729
        %v731 = vpop.f32.mrf.mxu0
        %732 = vmatprep.mubr.bf16.mxu0 0
        %733 = vmatmul.mubr.bf16.gmra.mxu0 %v495
        %v734 = vpop.f32.mrf.mxu0
        %v735 = vadd.f32 0.0, %v734
        %v736 = vpop.f32.mrf.mxu0
        %v737 = vpop.f32.mrf.mxu0
        %v738 = vadd.f32 0.0, %v737
        %v739 = vpop.f32.mrf.mxu0
        %740 = vmatprep.mubr.bf16.mxu0 0
        %741 = vmatmul.mubr.bf16.gmra.mxu0 %v498
        %v742 = vpop.f32.mrf.mxu0
        %v743 = vadd.f32 0.0, %v742
        %v744 = vpop.f32.mrf.mxu0
        %v745 = vpop.f32.mrf.mxu0
        %v746 = vadd.f32 0.0, %v745
        %v747 = vpop.f32.mrf.mxu0
        %748 = vmatprep.mubr.bf16.mxu0 0
        %749 = vmatmul.mubr.bf16.gmra.mxu0 %v501
        %v750 = vpop.f32.mrf.mxu0
        %v751 = vadd.f32 0.0, %v750
        %v752 = vpop.f32.mrf.mxu0
        %v753 = vpop.f32.mrf.mxu0
        %v754 = vadd.f32 0.0, %v753
        %v755 = vpop.f32.mrf.mxu0
        %756 = vmatprep.mubr.bf16.mxu0 0
        %757 = vmatmul.mubr.bf16.gmra.mxu0 %v504
        %v758 = vpop.f32.mrf.mxu0
        %v759 = vadd.f32 0.0, %v758
        %v760 = vpop.f32.mrf.mxu0
        %v761 = vpop.f32.mrf.mxu0
        %v762 = vadd.f32 0.0, %v761
        %v763 = vpop.f32.mrf.mxu0
        %764 = vmatprep.mubr.bf16.mxu0 0
        %765 = vmatmul.mubr.bf16.gmra.mxu0 %v507
        %v766 = vpop.f32.mrf.mxu0
        %v767 = vadd.f32 0.0, %v766
        %v768 = vpop.f32.mrf.mxu0
        %v769 = vpop.f32.mrf.mxu0
        %v770 = vadd.f32 0.0, %v769
        %v771 = vpop.f32.mrf.mxu0
        %772 = vmatprep.mubr.bf16.mxu0 0
        %773 = vmatmul.mubr.bf16.gmra.mxu0 %v510
        %v774 = vpop.f32.mrf.mxu0
        %v775 = vadd.f32 0.0, %v774
        %v776 = vpop.f32.mrf.mxu0
        %v777 = vpop.f32.mrf.mxu0
        %v778 = vadd.f32 0.0, %v777
        %v779 = vpop.f32.mrf.mxu0
        %780 = vmatprep.mubr.bf16.mxu0 0
        %781 = vmatmul.mubr.bf16.gmra.mxu0 %v513
        %v782 = vpop.f32.mrf.mxu0
        %v783 = vadd.f32 0.0, %v782
        %v784 = vpop.f32.mrf.mxu0
        %v785 = vpop.f32.mrf.mxu0
        %v786 = vadd.f32 0.0, %v785
        %v787 = vpop.f32.mrf.mxu0
        %788 = vmatprep.mubr.bf16.mxu0 0
        %789 = vmatmul.mubr.bf16.gmra.mxu0 %v516
        %v790 = vpop.f32.mrf.mxu0
        %v791 = vadd.f32 0.0, %v790
        %v792 = vpop.f32.mrf.mxu0
        %v793 = vpop.f32.mrf.mxu0
        %v794 = vadd.f32 0.0, %v793
        %v795 = vpop.f32.mrf.mxu0
        %796 = vmatprep.mubr.bf16.mxu0 0
        %797 = vmatmul.mubr.bf16.gmra.mxu0 %v519
        %v798 = vpop.f32.mrf.mxu0
        %v799 = vadd.f32 0.0, %v798
        %v800 = vpop.f32.mrf.mxu0
        %v801 = vpop.f32.mrf.mxu0
        %v802 = vadd.f32 0.0, %v801
        %v803 = vpop.f32.mrf.mxu0
        %804 = vmatprep.mubr.bf16.mxu0 0
        %805 = vmatmul.mubr.bf16.gmra.mxu0 %v522
        %v806 = vpop.f32.mrf.mxu0
        %v807 = vadd.f32 0.0, %v806
        %v808 = vpop.f32.mrf.mxu0
        %v809 = vpop.f32.mrf.mxu0
        %v810 = vadd.f32 0.0, %v809
        %v811 = vpop.f32.mrf.mxu0
        %812 = vdwg.mxu0
        %v813 = vld [vmem:[%s191] sm:$0xff]
        %v814 = vld [vmem:[%s191 + $0x8] sm:$0xff]
        %v815 = vld [vmem:[%s191 + $0x10] sm:$0xff]
        %v816 = vld [vmem:[%s191 + $0x18] sm:$0xff]
        %v817 = vld [vmem:[%s191 + $0x20] sm:$0xff]
        %v818 = vld [vmem:[%s191 + $0x28] sm:$0xff]
        %v819 = vld [vmem:[%s191 + $0x30] sm:$0xff]
        %v820 = vld [vmem:[%s191 + $0x38] sm:$0xff]
        %v821 = vld [vmem:[%s191 + $0x40] sm:$0xff]
        %v822 = vld [vmem:[%s191 + $0x48] sm:$0xff]
        %v823 = vld [vmem:[%s191 + $0x50] sm:$0xff]
        %v824 = vld [vmem:[%s191 + $0x58] sm:$0xff]
        %v825 = vld [vmem:[%s191 + $0x60] sm:$0xff]
        %v826 = vld [vmem:[%s191 + $0x68] sm:$0xff]
        %v827 = vld [vmem:[%s191 + $0x70] sm:$0xff]
        %v828 = vld [vmem:[%s191 + $0x78] sm:$0xff]
        %v829 = vld [vmem:[%s191 + $0x80] sm:$0xff]
        %v830 = vld [vmem:[%s191 + $0x88] sm:$0xff]
        %v831 = vld [vmem:[%s191 + $0x90] sm:$0xff]
        %v832 = vld [vmem:[%s191 + $0x98] sm:$0xff]
        %v833 = vld [vmem:[%s191 + $0xa0] sm:$0xff]
        %v834 = vld [vmem:[%s191 + $0xa8] sm:$0xff]
        %v835 = vld [vmem:[%s191 + $0xb0] sm:$0xff]
        %v836 = vld [vmem:[%s191 + $0xb8] sm:$0xff]
        %v837 = vld [vmem:[%s191 + $0xc0] sm:$0xff]
        %v838 = vld [vmem:[%s191 + $0xc8] sm:$0xff]
        %v839 = vld [vmem:[%s191 + $0xd0] sm:$0xff]
        %v840 = vld [vmem:[%s191 + $0xd8] sm:$0xff]
        %v841 = vld [vmem:[%s191 + $0xe0] sm:$0xff]
        %v842 = vld [vmem:[%s191 + $0xe8] sm:$0xff]
        %v843 = vld [vmem:[%s191 + $0xf0] sm:$0xff]
        %v844 = vld [vmem:[%s191 + $0xf8] sm:$0xff]
        %v845 = vld [vmem:[%s191 + $0x100] sm:$0xff]
        %v846 = vld [vmem:[%s191 + $0x108] sm:$0xff]
        %v847 = vld [vmem:[%s191 + $0x110] sm:$0xff]
        %v848 = vld [vmem:[%s191 + $0x118] sm:$0xff]
        %v849 = vld [vmem:[%s191 + $0x120] sm:$0xff]
        %v850 = vld [vmem:[%s191 + $0x128] sm:$0xff]
        %v851 = vld [vmem:[%s191 + $0x130] sm:$0xff]
        %v852 = vld [vmem:[%s191 + $0x138] sm:$0xff]
        %v853 = vld [vmem:[%s191 + $0x140] sm:$0xff]
        %v854 = vld [vmem:[%s191 + $0x148] sm:$0xff]
        %v855 = vld [vmem:[%s191 + $0x150] sm:$0xff]
        %v856 = vld [vmem:[%s191 + $0x158] sm:$0xff]
        %v857 = vld [vmem:[%s191 + $0x160] sm:$0xff]
        %v858 = vld [vmem:[%s191 + $0x168] sm:$0xff]
        %v859 = vld [vmem:[%s191 + $0x170] sm:$0xff]
        %v860 = vld [vmem:[%s191 + $0x178] sm:$0xff]
        %v861 = vld [vmem:[%s191 + $0x180] sm:$0xff]
        %v862 = vld [vmem:[%s191 + $0x188] sm:$0xff]
        %v863 = vld [vmem:[%s191 + $0x190] sm:$0xff]
        %v864 = vld [vmem:[%s191 + $0x198] sm:$0xff]
        %v865 = vld [vmem:[%s191 + $0x1a0] sm:$0xff]
        %v866 = vld [vmem:[%s191 + $0x1a8] sm:$0xff]
        %v867 = vld [vmem:[%s191 + $0x1b0] sm:$0xff]
        %v868 = vld [vmem:[%s191 + $0x1b8] sm:$0xff]
        %v869 = vld [vmem:[%s191 + $0x1c0] sm:$0xff]
        %v870 = vld [vmem:[%s191 + $0x1c8] sm:$0xff]
        %v871 = vld [vmem:[%s191 + $0x1d0] sm:$0xff]
        %v872 = vld [vmem:[%s191 + $0x1d8] sm:$0xff]
        %v873 = vld [vmem:[%s191 + $0x1e0] sm:$0xff]
        %v874 = vld [vmem:[%s191 + $0x1e8] sm:$0xff]
        %v875 = vld [vmem:[%s191 + $0x1f0] sm:$0xff]
        %v876 = vld [vmem:[%s191 + $0x1f8] sm:$0xff]
        %878 = vset.pattern.permute.xlu0 0
        %879 = vperm.xlu0 %878, %v813
        %v880 = vpop.permute.xlu0 %879
        %883 = vset.pattern.permute.xlu0 0
        %884 = vperm.xlu0 %883, %v814
        %v885 = vpop.permute.xlu0 %884
        %888 = vset.pattern.permute.xlu0 0
        %889 = vperm.xlu0 %888, %v815
        %v890 = vpop.permute.xlu0 %889
        %893 = vset.pattern.permute.xlu0 0
        %894 = vperm.xlu0 %893, %v816
        %v895 = vpop.permute.xlu0 %894
        %898 = vset.pattern.permute.xlu0 0
        %899 = vperm.xlu0 %898, %v817
        %v900 = vpop.permute.xlu0 %899
        %903 = vset.pattern.permute.xlu0 0
        %904 = vperm.xlu0 %903, %v818
        %v905 = vpop.permute.xlu0 %904
        %908 = vset.pattern.permute.xlu0 0
        %909 = vperm.xlu0 %908, %v819
        %v910 = vpop.permute.xlu0 %909
        %913 = vset.pattern.permute.xlu0 0
        %914 = vperm.xlu0 %913, %v820
        %v915 = vpop.permute.xlu0 %914
        %918 = vset.pattern.permute.xlu0 0
        %919 = vperm.xlu0 %918, %v821
        %v920 = vpop.permute.xlu0 %919
        %923 = vset.pattern.permute.xlu0 0
        %924 = vperm.xlu0 %923, %v822
        %v925 = vpop.permute.xlu0 %924
        %928 = vset.pattern.permute.xlu0 0
        %929 = vperm.xlu0 %928, %v823
        %v930 = vpop.permute.xlu0 %929
        %933 = vset.pattern.permute.xlu0 0
        %934 = vperm.xlu0 %933, %v824
        %v935 = vpop.permute.xlu0 %934
        %938 = vset.pattern.permute.xlu0 0
        %939 = vperm.xlu0 %938, %v825
        %v940 = vpop.permute.xlu0 %939
        %943 = vset.pattern.permute.xlu0 0
        %944 = vperm.xlu0 %943, %v826
        %v945 = vpop.permute.xlu0 %944
        %948 = vset.pattern.permute.xlu0 0
        %949 = vperm.xlu0 %948, %v827
        %v950 = vpop.permute.xlu0 %949
        %953 = vset.pattern.permute.xlu0 0
        %954 = vperm.xlu0 %953, %v828
        %v955 = vpop.permute.xlu0 %954
        %958 = vset.pattern.permute.xlu0 0
        %959 = vperm.xlu0 %958, %v829
        %v960 = vpop.permute.xlu0 %959
        %963 = vset.pattern.permute.xlu0 0
        %964 = vperm.xlu0 %963, %v830
        %v965 = vpop.permute.xlu0 %964
        %968 = vset.pattern.permute.xlu0 0
        %969 = vperm.xlu0 %968, %v831
        %v970 = vpop.permute.xlu0 %969
        %973 = vset.pattern.permute.xlu0 0
        %974 = vperm.xlu0 %973, %v832
        %v975 = vpop.permute.xlu0 %974
        %978 = vset.pattern.permute.xlu0 0
        %979 = vperm.xlu0 %978, %v833
        %v980 = vpop.permute.xlu0 %979
        %983 = vset.pattern.permute.xlu0 0
        %984 = vperm.xlu0 %983, %v834
        %v985 = vpop.permute.xlu0 %984
        %988 = vset.pattern.permute.xlu0 0
        %989 = vperm.xlu0 %988, %v835
        %v990 = vpop.permute.xlu0 %989
        %993 = vset.pattern.permute.xlu0 0
        %994 = vperm.xlu0 %993, %v836
        %v995 = vpop.permute.xlu0 %994
        %998 = vset.pattern.permute.xlu0 0
        %999 = vperm.xlu0 %998, %v837
        %v1000 = vpop.permute.xlu0 %999
        %1003 = vset.pattern.permute.xlu0 0
        %1004 = vperm.xlu0 %1003, %v838
        %v1005 = vpop.permute.xlu0 %1004
        %1008 = vset.pattern.permute.xlu0 0
        %1009 = vperm.xlu0 %1008, %v839
        %v1010 = vpop.permute.xlu0 %1009
        %1013 = vset.pattern.permute.xlu0 0
        %1014 = vperm.xlu0 %1013, %v840
        %v1015 = vpop.permute.xlu0 %1014
        %1018 = vset.pattern.permute.xlu0 0
        %1019 = vperm.xlu0 %1018, %v841
        %v1020 = vpop.permute.xlu0 %1019
        %1023 = vset.pattern.permute.xlu0 0
        %1024 = vperm.xlu0 %1023, %v842
        %v1025 = vpop.permute.xlu0 %1024
        %1028 = vset.pattern.permute.xlu0 0
        %1029 = vperm.xlu0 %1028, %v843
        %v1030 = vpop.permute.xlu0 %1029
        %1033 = vset.pattern.permute.xlu0 0
        %1034 = vperm.xlu0 %1033, %v844
        %v1035 = vpop.permute.xlu0 %1034
        %1038 = vset.pattern.permute.xlu0 0
        %1039 = vperm.xlu0 %1038, %v845
        %v1040 = vpop.permute.xlu0 %1039
        %1043 = vset.pattern.permute.xlu0 0
        %1044 = vperm.xlu0 %1043, %v846
        %v1045 = vpop.permute.xlu0 %1044
        %1048 = vset.pattern.permute.xlu0 0
        %1049 = vperm.xlu0 %1048, %v847
        %v1050 = vpop.permute.xlu0 %1049
        %1053 = vset.pattern.permute.xlu0 0
        %1054 = vperm.xlu0 %1053, %v848
        %v1055 = vpop.permute.xlu0 %1054
        %1058 = vset.pattern.permute.xlu0 0
        %1059 = vperm.xlu0 %1058, %v849
        %v1060 = vpop.permute.xlu0 %1059
        %1063 = vset.pattern.permute.xlu0 0
        %1064 = vperm.xlu0 %1063, %v850
        %v1065 = vpop.permute.xlu0 %1064
        %1068 = vset.pattern.permute.xlu0 0
        %1069 = vperm.xlu0 %1068, %v851
        %v1070 = vpop.permute.xlu0 %1069
        %1073 = vset.pattern.permute.xlu0 0
        %1074 = vperm.xlu0 %1073, %v852
        %v1075 = vpop.permute.xlu0 %1074
        %1078 = vset.pattern.permute.xlu0 0
        %1079 = vperm.xlu0 %1078, %v853
        %v1080 = vpop.permute.xlu0 %1079
        %1083 = vset.pattern.permute.xlu0 0
        %1084 = vperm.xlu0 %1083, %v854
        %v1085 = vpop.permute.xlu0 %1084
        %1088 = vset.pattern.permute.xlu0 0
        %1089 = vperm.xlu0 %1088, %v855
        %v1090 = vpop.permute.xlu0 %1089
        %1093 = vset.pattern.permute.xlu0 0
        %1094 = vperm.xlu0 %1093, %v856
        %v1095 = vpop.permute.xlu0 %1094
        %1098 = vset.pattern.permute.xlu0 0
        %1099 = vperm.xlu0 %1098, %v857
        %v1100 = vpop.permute.xlu0 %1099
        %1103 = vset.pattern.permute.xlu0 0
        %1104 = vperm.xlu0 %1103, %v858
        %v1105 = vpop.permute.xlu0 %1104
        %1108 = vset.pattern.permute.xlu0 0
        %1109 = vperm.xlu0 %1108, %v859
        %v1110 = vpop.permute.xlu0 %1109
        %1113 = vset.pattern.permute.xlu0 0
        %1114 = vperm.xlu0 %1113, %v860
        %v1115 = vpop.permute.xlu0 %1114
        %1118 = vset.pattern.permute.xlu0 0
        %1119 = vperm.xlu0 %1118, %v861
        %v1120 = vpop.permute.xlu0 %1119
        %1123 = vset.pattern.permute.xlu0 0
        %1124 = vperm.xlu0 %1123, %v862
        %v1125 = vpop.permute.xlu0 %1124
        %1128 = vset.pattern.permute.xlu0 0
        %1129 = vperm.xlu0 %1128, %v863
        %v1130 = vpop.permute.xlu0 %1129
        %1133 = vset.pattern.permute.xlu0 0
        %1134 = vperm.xlu0 %1133, %v864
        %v1135 = vpop.permute.xlu0 %1134
        %1138 = vset.pattern.permute.xlu0 0
        %1139 = vperm.xlu0 %1138, %v865
        %v1140 = vpop.permute.xlu0 %1139
        %1143 = vset.pattern.permute.xlu0 0
        %1144 = vperm.xlu0 %1143, %v866
        %v1145 = vpop.permute.xlu0 %1144
        %1148 = vset.pattern.permute.xlu0 0
        %1149 = vperm.xlu0 %1148, %v867
        %v1150 = vpop.permute.xlu0 %1149
        %1153 = vset.pattern.permute.xlu0 0
        %1154 = vperm.xlu0 %1153, %v868
        %v1155 = vpop.permute.xlu0 %1154
        %1158 = vset.pattern.permute.xlu0 0
        %1159 = vperm.xlu0 %1158, %v869
        %v1160 = vpop.permute.xlu0 %1159
        %1163 = vset.pattern.permute.xlu0 0
        %1164 = vperm.xlu0 %1163, %v870
        %v1165 = vpop.permute.xlu0 %1164
        %1168 = vset.pattern.permute.xlu0 0
        %1169 = vperm.xlu0 %1168, %v871
        %v1170 = vpop.permute.xlu0 %1169
        %1173 = vset.pattern.permute.xlu0 0
        %1174 = vperm.xlu0 %1173, %v872
        %v1175 = vpop.permute.xlu0 %1174
        %1178 = vset.pattern.permute.xlu0 0
        %1179 = vperm.xlu0 %1178, %v873
        %v1180 = vpop.permute.xlu0 %1179
        %1183 = vset.pattern.permute.xlu0 0
        %1184 = vperm.xlu0 %1183, %v874
        %v1185 = vpop.permute.xlu0 %1184
        %1188 = vset.pattern.permute.xlu0 0
        %1189 = vperm.xlu0 %1188, %v875
        %v1190 = vpop.permute.xlu0 %1189
        %1193 = vset.pattern.permute.xlu0 0
        %1194 = vperm.xlu0 %1193, %v876
        %v1195 = vpop.permute.xlu0 %1194
        %v1197 = vmul.f32 %v880, %v559
        %v1198 = vmul.f32 %v885, %v562
        %v1199 = vmul.f32 %v890, %v567
        %v1200 = vmul.f32 %v895, %v570
        %v1201 = vmul.f32 %v900, %v575
        %v1202 = vmul.f32 %v905, %v578
        %v1203 = vmul.f32 %v910, %v583
        %v1204 = vmul.f32 %v915, %v586
        %v1205 = vmul.f32 %v920, %v591
        %v1206 = vmul.f32 %v925, %v594
        %v1207 = vmul.f32 %v930, %v599
        %v1208 = vmul.f32 %v935, %v602
        %v1209 = vmul.f32 %v940, %v607
        %v1210 = vmul.f32 %v945, %v610
        %v1211 = vmul.f32 %v950, %v615
        %v1212 = vmul.f32 %v955, %v618
        %v1213 = vmul.f32 %v960, %v623
        %v1214 = vmul.f32 %v965, %v626
        %v1215 = vmul.f32 %v970, %v631
        %v1216 = vmul.f32 %v975, %v634
        %v1217 = vmul.f32 %v980, %v639
        %v1218 = vmul.f32 %v985, %v642
        %v1219 = vmul.f32 %v990, %v647
        %v1220 = vmul.f32 %v995, %v650
        %v1221 = vmul.f32 %v1000, %v655
        %v1222 = vmul.f32 %v1005, %v658
        %v1223 = vmul.f32 %v1010, %v663
        %v1224 = vmul.f32 %v1015, %v666
        %v1225 = vmul.f32 %v1020, %v671
        %v1226 = vmul.f32 %v1025, %v674
        %v1227 = vmul.f32 %v1030, %v679
        %v1228 = vmul.f32 %v1035, %v682
        %v1229 = vmul.f32 %v1040, %v687
        %v1230 = vmul.f32 %v1045, %v690
        %v1231 = vmul.f32 %v1050, %v695
        %v1232 = vmul.f32 %v1055, %v698
        %v1233 = vmul.f32 %v1060, %v703
        %v1234 = vmul.f32 %v1065, %v706
        %v1235 = vmul.f32 %v1070, %v711
        %v1236 = vmul.f32 %v1075, %v714
        %v1237 = vmul.f32 %v1080, %v719
        %v1238 = vmul.f32 %v1085, %v722
        %v1239 = vmul.f32 %v1090, %v727
        %v1240 = vmul.f32 %v1095, %v730
        %v1241 = vmul.f32 %v1100, %v735
        %v1242 = vmul.f32 %v1105, %v738
        %v1243 = vmul.f32 %v1110, %v743
        %v1244 = vmul.f32 %v1115, %v746
        %v1245 = vmul.f32 %v1120, %v751
        %v1246 = vmul.f32 %v1125, %v754
        %v1247 = vmul.f32 %v1130, %v759
        %v1248 = vmul.f32 %v1135, %v762
        %v1249 = vmul.f32 %v1140, %v767
        %v1250 = vmul.f32 %v1145, %v770
        %v1251 = vmul.f32 %v1150, %v775
        %v1252 = vmul.f32 %v1155, %v778
        %v1253 = vmul.f32 %v1160, %v783
        %v1254 = vmul.f32 %v1165, %v786
        %v1255 = vmul.f32 %v1170, %v791
        %v1256 = vmul.f32 %v1175, %v794
        %v1257 = vmul.f32 %v1180, %v799
        %v1258 = vmul.f32 %v1185, %v802
        %v1259 = vmul.f32 %v1190, %v807
        %v1260 = vmul.f32 %v1195, %v810
        %v1261 = vpack.c.bf16 %v1198, %v1197
        %v1262 = vpack.c.bf16 %v1200, %v1199
        %v1263 = vpack.c.bf16 %v1202, %v1201
        %v1264 = vpack.c.bf16 %v1204, %v1203
        %v1265 = vpack.c.bf16 %v1206, %v1205
        %v1266 = vpack.c.bf16 %v1208, %v1207
        %v1267 = vpack.c.bf16 %v1210, %v1209
        %v1268 = vpack.c.bf16 %v1212, %v1211
        %v1269 = vpack.c.bf16 %v1214, %v1213
        %v1270 = vpack.c.bf16 %v1216, %v1215
        %v1271 = vpack.c.bf16 %v1218, %v1217
        %v1272 = vpack.c.bf16 %v1220, %v1219
        %v1273 = vpack.c.bf16 %v1222, %v1221
        %v1274 = vpack.c.bf16 %v1224, %v1223
        %v1275 = vpack.c.bf16 %v1226, %v1225
        %v1276 = vpack.c.bf16 %v1228, %v1227
        %v1277 = vpack.c.bf16 %v1230, %v1229
        %v1278 = vpack.c.bf16 %v1232, %v1231
        %v1279 = vpack.c.bf16 %v1234, %v1233
        %v1280 = vpack.c.bf16 %v1236, %v1235
        %v1281 = vpack.c.bf16 %v1238, %v1237
        %v1282 = vpack.c.bf16 %v1240, %v1239
        %v1283 = vpack.c.bf16 %v1242, %v1241
        %v1284 = vpack.c.bf16 %v1244, %v1243
        %v1285 = vpack.c.bf16 %v1246, %v1245
        %v1286 = vpack.c.bf16 %v1248, %v1247
        %v1287 = vpack.c.bf16 %v1250, %v1249
        %v1288 = vpack.c.bf16 %v1252, %v1251
        %v1289 = vpack.c.bf16 %v1254, %v1253
        %v1290 = vpack.c.bf16 %v1256, %v1255
        %v1291 = vpack.c.bf16 %v1258, %v1257
        %v1292 = vpack.c.bf16 %v1260, %v1259
        %v1325 = vunpack.c.l.b16 %v1261
        %v1326 = vunpack.c.h.b16 %v1261
        %v1327 = vunpack.c.l.b16 %v1262
        %v1328 = vunpack.c.h.b16 %v1262
        %v1329 = vunpack.c.l.b16 %v1263
        %v1330 = vunpack.c.h.b16 %v1263
        %v1331 = vunpack.c.l.b16 %v1264
        %v1332 = vunpack.c.h.b16 %v1264
        %v1333 = vunpack.c.l.b16 %v1265
        %v1334 = vunpack.c.h.b16 %v1265
        %v1335 = vunpack.c.l.b16 %v1266
        %v1336 = vunpack.c.h.b16 %v1266
        %v1337 = vunpack.c.l.b16 %v1267
        %v1338 = vunpack.c.h.b16 %v1267
        %v1339 = vunpack.c.l.b16 %v1268
        %v1340 = vunpack.c.h.b16 %v1268
        %v1341 = vunpack.c.l.b16 %v1269
        %v1342 = vunpack.c.h.b16 %v1269
        %v1343 = vunpack.c.l.b16 %v1270
        %v1344 = vunpack.c.h.b16 %v1270
        %v1345 = vunpack.c.l.b16 %v1271
        %v1346 = vunpack.c.h.b16 %v1271
        %v1347 = vunpack.c.l.b16 %v1272
        %v1348 = vunpack.c.h.b16 %v1272
        %v1349 = vunpack.c.l.b16 %v1273
        %v1350 = vunpack.c.h.b16 %v1273
        %v1351 = vunpack.c.l.b16 %v1274
        %v1352 = vunpack.c.h.b16 %v1274
        %v1353 = vunpack.c.l.b16 %v1275
        %v1354 = vunpack.c.h.b16 %v1275
        %v1355 = vunpack.c.l.b16 %v1276
        %v1356 = vunpack.c.h.b16 %v1276
        %v1357 = vunpack.c.l.b16 %v1277
        %v1358 = vunpack.c.h.b16 %v1277
        %v1359 = vunpack.c.l.b16 %v1278
        %v1360 = vunpack.c.h.b16 %v1278
        %v1361 = vunpack.c.l.b16 %v1279
        %v1362 = vunpack.c.h.b16 %v1279
        %v1363 = vunpack.c.l.b16 %v1280
        %v1364 = vunpack.c.h.b16 %v1280
        %v1365 = vunpack.c.l.b16 %v1281
        %v1366 = vunpack.c.h.b16 %v1281
        %v1367 = vunpack.c.l.b16 %v1282
        %v1368 = vunpack.c.h.b16 %v1282
        %v1369 = vunpack.c.l.b16 %v1283
        %v1370 = vunpack.c.h.b16 %v1283
        %v1371 = vunpack.c.l.b16 %v1284
        %v1372 = vunpack.c.h.b16 %v1284
        %v1373 = vunpack.c.l.b16 %v1285
        %v1374 = vunpack.c.h.b16 %v1285
        %v1375 = vunpack.c.l.b16 %v1286
        %v1376 = vunpack.c.h.b16 %v1286
        %v1377 = vunpack.c.l.b16 %v1287
        %v1378 = vunpack.c.h.b16 %v1287
        %v1379 = vunpack.c.l.b16 %v1288
        %v1380 = vunpack.c.h.b16 %v1288
        %v1381 = vunpack.c.l.b16 %v1289
        %v1382 = vunpack.c.h.b16 %v1289
        %v1383 = vunpack.c.l.b16 %v1290
        %v1384 = vunpack.c.h.b16 %v1290
        %v1385 = vunpack.c.l.b16 %v1291
        %v1386 = vunpack.c.h.b16 %v1291
        %v1387 = vunpack.c.l.b16 %v1292
        %v1388 = vunpack.c.h.b16 %v1292
        %v1389 = vpack.c.b16 %v1325, %v1325
        %v1390 = vpack.c.b16 %v1326, %v1326
        %v1391 = vpack.c.b16 %v1327, %v1327
        %v1392 = vpack.c.b16 %v1328, %v1328
        %v1393 = vpack.c.b16 %v1329, %v1329
        %v1394 = vpack.c.b16 %v1330, %v1330
        %v1395 = vpack.c.b16 %v1331, %v1331
        %v1396 = vpack.c.b16 %v1332, %v1332
        %v1397 = vpack.c.b16 %v1333, %v1333
        %v1398 = vpack.c.b16 %v1334, %v1334
        %v1399 = vpack.c.b16 %v1335, %v1335
        %v1400 = vpack.c.b16 %v1336, %v1336
        %v1401 = vpack.c.b16 %v1337, %v1337
        %v1402 = vpack.c.b16 %v1338, %v1338
        %v1403 = vpack.c.b16 %v1339, %v1339
        %v1404 = vpack.c.b16 %v1340, %v1340
        %v1405 = vpack.c.b16 %v1341, %v1341
        %v1406 = vpack.c.b16 %v1342, %v1342
        %v1407 = vpack.c.b16 %v1343, %v1343
        %v1408 = vpack.c.b16 %v1344, %v1344
        %v1409 = vpack.c.b16 %v1345, %v1345
        %v1410 = vpack.c.b16 %v1346, %v1346
        %v1411 = vpack.c.b16 %v1347, %v1347
        %v1412 = vpack.c.b16 %v1348, %v1348
        %v1413 = vpack.c.b16 %v1349, %v1349
        %v1414 = vpack.c.b16 %v1350, %v1350
        %v1415 = vpack.c.b16 %v1351, %v1351
        %v1416 = vpack.c.b16 %v1352, %v1352
        %v1417 = vpack.c.b16 %v1353, %v1353
        %v1418 = vpack.c.b16 %v1354, %v1354
        %v1419 = vpack.c.b16 %v1355, %v1355
        %v1420 = vpack.c.b16 %v1356, %v1356
        %v1421 = vpack.c.b16 %v1357, %v1357
        %v1422 = vpack.c.b16 %v1358, %v1358
        %v1423 = vpack.c.b16 %v1359, %v1359
        %v1424 = vpack.c.b16 %v1360, %v1360
        %v1425 = vpack.c.b16 %v1361, %v1361
        %v1426 = vpack.c.b16 %v1362, %v1362
        %v1427 = vpack.c.b16 %v1363, %v1363
        %v1428 = vpack.c.b16 %v1364, %v1364
        %v1429 = vpack.c.b16 %v1365, %v1365
        %v1430 = vpack.c.b16 %v1366, %v1366
        %v1431 = vpack.c.b16 %v1367, %v1367
        %v1432 = vpack.c.b16 %v1368, %v1368
        %v1433 = vpack.c.b16 %v1369, %v1369
        %v1434 = vpack.c.b16 %v1370, %v1370
        %v1435 = vpack.c.b16 %v1371, %v1371
        %v1436 = vpack.c.b16 %v1372, %v1372
        %v1437 = vpack.c.b16 %v1373, %v1373
        %v1438 = vpack.c.b16 %v1374, %v1374
        %v1439 = vpack.c.b16 %v1375, %v1375
        %v1440 = vpack.c.b16 %v1376, %v1376
        %v1441 = vpack.c.b16 %v1377, %v1377
        %v1442 = vpack.c.b16 %v1378, %v1378
        %v1443 = vpack.c.b16 %v1379, %v1379
        %v1444 = vpack.c.b16 %v1380, %v1380
        %v1445 = vpack.c.b16 %v1381, %v1381
        %v1446 = vpack.c.b16 %v1382, %v1382
        %v1447 = vpack.c.b16 %v1383, %v1383
        %v1448 = vpack.c.b16 %v1384, %v1384
        %v1449 = vpack.c.b16 %v1385, %v1385
        %v1450 = vpack.c.b16 %v1386, %v1386
        %v1451 = vpack.c.b16 %v1387, %v1387
        %v1452 = vpack.c.b16 %v1388, %v1388
        %1517 = vst [vmem:[%s180] sm:$0xf] %v1389
        %1518 = vst [vmem:[%s180 + $0x4] sm:$0xf] %v1390
        %1519 = vst [vmem:[%s180 + $0x8] sm:$0xf] %v1391
        %1520 = vst [vmem:[%s180 + $0xc] sm:$0xf] %v1392
        %1521 = vst [vmem:[%s180 + $0x10] sm:$0xf] %v1393
        %1522 = vst [vmem:[%s180 + $0x14] sm:$0xf] %v1394
        %1523 = vst [vmem:[%s180 + $0x18] sm:$0xf] %v1395
        %1524 = vst [vmem:[%s180 + $0x1c] sm:$0xf] %v1396
        %1525 = vst [vmem:[%s180 + $0x20] sm:$0xf] %v1397
        %1526 = vst [vmem:[%s180 + $0x24] sm:$0xf] %v1398
        %1527 = vst [vmem:[%s180 + $0x28] sm:$0xf] %v1399
        %1528 = vst [vmem:[%s180 + $0x2c] sm:$0xf] %v1400
        %1529 = vst [vmem:[%s180 + $0x30] sm:$0xf] %v1401
        %1530 = vst [vmem:[%s180 + $0x34] sm:$0xf] %v1402
        %1531 = vst [vmem:[%s180 + $0x38] sm:$0xf] %v1403
        %1532 = vst [vmem:[%s180 + $0x3c] sm:$0xf] %v1404
        %1533 = vst [vmem:[%s180 + $0x40] sm:$0xf] %v1405
        %1534 = vst [vmem:[%s180 + $0x44] sm:$0xf] %v1406
        %1535 = vst [vmem:[%s180 + $0x48] sm:$0xf] %v1407
        %1536 = vst [vmem:[%s180 + $0x4c] sm:$0xf] %v1408
        %1537 = vst [vmem:[%s180 + $0x50] sm:$0xf] %v1409
        %1538 = vst [vmem:[%s180 + $0x54] sm:$0xf] %v1410
        %1539 = vst [vmem:[%s180 + $0x58] sm:$0xf] %v1411
        %1540 = vst [vmem:[%s180 + $0x5c] sm:$0xf] %v1412
        %1541 = vst [vmem:[%s180 + $0x60] sm:$0xf] %v1413
        %1542 = vst [vmem:[%s180 + $0x64] sm:$0xf] %v1414
        %1543 = vst [vmem:[%s180 + $0x68] sm:$0xf] %v1415
        %1544 = vst [vmem:[%s180 + $0x6c] sm:$0xf] %v1416
        %1545 = vst [vmem:[%s180 + $0x70] sm:$0xf] %v1417
        %1546 = vst [vmem:[%s180 + $0x74] sm:$0xf] %v1418
        %1547 = vst [vmem:[%s180 + $0x78] sm:$0xf] %v1419
        %1548 = vst [vmem:[%s180 + $0x7c] sm:$0xf] %v1420
        %1549 = vst [vmem:[%s180 + $0x80] sm:$0xf] %v1421
        %1550 = vst [vmem:[%s180 + $0x84] sm:$0xf] %v1422
        %1551 = vst [vmem:[%s180 + $0x88] sm:$0xf] %v1423
        %1552 = vst [vmem:[%s180 + $0x8c] sm:$0xf] %v1424
        %1553 = vst [vmem:[%s180 + $0x90] sm:$0xf] %v1425
        %1554 = vst [vmem:[%s180 + $0x94] sm:$0xf] %v1426
        %1555 = vst [vmem:[%s180 + $0x98] sm:$0xf] %v1427
        %1556 = vst [vmem:[%s180 + $0x9c] sm:$0xf] %v1428
        %1557 = vst [vmem:[%s180 + $0xa0] sm:$0xf] %v1429
        %1558 = vst [vmem:[%s180 + $0xa4] sm:$0xf] %v1430
        %1559 = vst [vmem:[%s180 + $0xa8] sm:$0xf] %v1431
        %1560 = vst [vmem:[%s180 + $0xac] sm:$0xf] %v1432
        %1561 = vst [vmem:[%s180 + $0xb0] sm:$0xf] %v1433
        %1562 = vst [vmem:[%s180 + $0xb4] sm:$0xf] %v1434
        %1563 = vst [vmem:[%s180 + $0xb8] sm:$0xf] %v1435
        %1564 = vst [vmem:[%s180 + $0xbc] sm:$0xf] %v1436
        %1565 = vst [vmem:[%s180 + $0xc0] sm:$0xf] %v1437
        %1566 = vst [vmem:[%s180 + $0xc4] sm:$0xf] %v1438
        %1567 = vst [vmem:[%s180 + $0xc8] sm:$0xf] %v1439
        %1568 = vst [vmem:[%s180 + $0xcc] sm:$0xf] %v1440
        %1569 = vst [vmem:[%s180 + $0xd0] sm:$0xf] %v1441
        %1570 = vst [vmem:[%s180 + $0xd4] sm:$0xf] %v1442
        %1571 = vst [vmem:[%s180 + $0xd8] sm:$0xf] %v1443
        %1572 = vst [vmem:[%s180 + $0xdc] sm:$0xf] %v1444
        %1573 = vst [vmem:[%s180 + $0xe0] sm:$0xf] %v1445
        %1574 = vst [vmem:[%s180 + $0xe4] sm:$0xf] %v1446
        %1575 = vst [vmem:[%s180 + $0xe8] sm:$0xf] %v1447
        %1576 = vst [vmem:[%s180 + $0xec] sm:$0xf] %v1448
        %1577 = vst [vmem:[%s180 + $0xf0] sm:$0xf] %v1449
        %1578 = vst [vmem:[%s180 + $0xf4] sm:$0xf] %v1450
        %1579 = vst [vmem:[%s180 + $0xf8] sm:$0xf] %v1451
        %1580 = vst [vmem:[%s180 + $0xfc] sm:$0xf] %v1452
        %s1581 = sand.u32 %s98, 1
        %s1582 = scalar_lea.sflag [#allocation3], %s1581
        %s1583 = sand.u32 %s98, 1
        %s1584 = smul.addr %s1583, 256
        %s1585 = scalar_lea.vmem [#allocation2], %s1584
        // Predicated region
        $region33: #{tpu_custom_call.1} parent=31 // pred_check
          %p1586 = pneg %p108
        $region34: #{tpu_custom_call.1} parent=31 // pred_check_branch
          %1588 = sbr.rel (%p1586) target = $region36
        $region35: #{tpu_custom_call.1} parent=31 // pred_region
          %s1589 = smul.u32 64, %s17
          %s1591 = ssub.s32 4096, 4096
          %1592 = vsyncadd %s1582, %s1591
          %s1593 = smul.addr %s1589, 64
          %s1594 = scalar_lea.hbm %s3, %s1593
          %s1595 = sshll.u32 %s1585, 4
          %s1596 = int_to_ptr.vmem [resolvable:$true] %s1595
          %1601 = dma.vmem_to_hbm [thread:$0]  %s1596, 4096, %s1594, %s1582, 64, 64, 4
        $region36: #{tpu_custom_call.1} parent=31 // pred_fallthru
          _
      $region32: #{tpu_custom_call.1} parent=5 // pred_fallthru
        _
      %p1602 = scmp.le.s32.totalorder 2, %s12
      // Predicated region
      $region37: #{tpu_custom_call.1} parent=5 // pred_check
        %p1603 = pneg %p1602
      $region38: #{tpu_custom_call.1} parent=5 // pred_check_branch
        %1605 = sbr.rel (%p1603) target = $region40
      $region39: #{tpu_custom_call.1} parent=5 // pred_region
        %s1606 = ssub.s32 %s12, 2
        // Predicated region
        $region41: #{tpu_custom_call.1} parent=39 // pred_check
          %p1607 = pneg %p114
        $region42: #{tpu_custom_call.1} parent=39 // pred_check_branch
          %1609 = sbr.rel (%p1607) target = $region44
        $region43: #{tpu_custom_call.1} parent=39 // pred_region
          %s1610 = sand.u32 %s99, 1
          %s1611 = scalar_lea.sflag [#allocation3], %s1610
          %s1612 = sand.u32 %s99, 1
          %s1613 = smul.addr %s1612, 256
          %s1614 = scalar_lea.vmem [#allocation2], %s1613
          %1615 = dma.done %s1611, 4096
        $region44: #{tpu_custom_call.1} parent=39 // pred_fallthru
          _
      $region40: #{tpu_custom_call.1} parent=5 // pred_fallthru
        _
    $region6: #{tpu_custom_call.1} parent=1 // loop_footer
      %s16 = sadd.s32 1, %s12
    $region7: #{tpu_custom_call.1} parent=1 // loop_footer_branch
      %11 = sbr.rel target = $region3
    $region8: #{tpu_custom_call.1} parent=1 // loop_exit
      _
    %1616 = vsyncpa [#allocation3], 1
    %s1617 = scalar_lea.sflag [#allocation3], 1
    %1618 = vsyncpa %s1617, 1

</llo_original>
